<compile_context>
chip_gen: v7x
topology: tpu7x:2x2x1
jax: 0.10.0
libtpu: 0.0.40
codegen_flags: <defaults>
</compile_context>

<pallas_src>
import functools
from typing import NamedTuple

import jax
import jax.numpy as jnp
from jax.experimental import pallas as pl
from jax.experimental.pallas import tpu as pltpu


# ---------------------------------------------------------------------------
# Config
# ---------------------------------------------------------------------------

class EncoderConfig(NamedTuple):
    n_agents: int
    n_enemies: int
    own_obs_dim: int
    obs_nf_en: int
    obs_nf_al: int
    state_nf_al: int
    state_nf_en: int
    n_actions_no_attack: int
    state_last_action: bool
    entity_embed_dim: int
    state_latent_dim: int
    task_repre_dim: int


_ROW_ALIGN = 16          # sublane alignment (covers bf16 (16,128) and f32 (8,128))
_MAX_TILE_ROWS = 512     # >=512 rows reaches ~85% HBM roofline; small enough for v7x VMEM


def _round_up(x, m):
    return ((x + m - 1) // m) * m


# ---------------------------------------------------------------------------
# Pallas kernel: 4 matmuls + 2 bias adds per batch tile, everything lane-dense
# ---------------------------------------------------------------------------

def _pooling_encoder_kernel(
    obs_ref,      # (tile_bs, n_ag*K_obs)  compute_dtype, batch-outer / agent blocks on lanes
    st_ref,       # (tile_bs, K_st)        compute_dtype
    w1o_ref,      # (n_ag*K_obs, n_ag*E)   block-diag obs embed weight (mean + sum folded in)
    b1o_ref,      # (1, n_ag*E)            f32 combined obs bias (tiled per agent)
    w1s_ref,      # (K_st, E)              stacked state embed weight (mean folded in)
    b1s_ref,      # (1, E)                 f32 combined state bias
    w2o_ref,      # (n_ag*E, n_ag*L)       block-diag per-agent obs-half hypernet weight
    w2s_ref,      # (E, n_ag*L)            per-agent state-half hypernet weight, packed on N
    out_ref,      # (tile_bs, n_ag*L)      f32
):
    # stage 1: pooled entity embeddings (mean already folded into weights/biases)
    obs_h = jnp.dot(obs_ref[...], w1o_ref[...],
                    preferred_element_type=jnp.float32) + b1o_ref[...]     # (tile, n_ag*E)
    st_h = jnp.dot(st_ref[...], w1s_ref[...],
                   preferred_element_type=jnp.float32) + b1s_ref[...]      # (tile, E)

    # stage 2: per-agent hypernet transform, all agents batched along the MXU N axis
    out = (jnp.dot(obs_h.astype(w2o_ref.dtype), w2o_ref[...],
                   preferred_element_type=jnp.float32)
           + jnp.dot(st_h.astype(w2s_ref.dtype), w2s_ref[...],
                     preferred_element_type=jnp.float32))                  # (tile, n_ag*L)
    out_ref[...] = out.astype(out_ref.dtype)


# ---------------------------------------------------------------------------
# Forward (wrapper glue is reshapes/sums + the tiny hypernet matmul; jitted)
# ---------------------------------------------------------------------------

@functools.partial(jax.jit, static_argnames=("cfg", "compute_dtype"))
def pooling_encoder_forward(params, obs, state, actions, task_repre, cfg, compute_dtype):
    n_ag, n_en = cfg.n_agents, cfg.n_enemies
    n_al = n_ag - 1
    nf_en, nf_al = cfg.obs_nf_en, cfg.obs_nf_al
    n_na = cfg.n_actions_no_attack
    n_actions = n_na + n_en
    E, L = cfg.entity_embed_dim, cfg.state_latent_dim

    if obs.ndim == 2:
        obs = obs.reshape(-1, n_ag, obs.shape[-1])
    bs = obs.shape[0]
    if actions.ndim == 2:
        actions = actions.reshape(bs, n_ag, actions.shape[-1])

    obs = obs.astype(jnp.float32)
    actions = actions.astype(jnp.float32)
    state = state.astype(jnp.float32)
    task_repre = task_repre.astype(jnp.float32)

    d0 = cfg.own_obs_dim
    d1 = d0 + n_en * nf_en

    # ---- obs-path features: batch-outer, agents packed on the lane axis (no transposes)
    attack = actions[..., n_na:]                                   # (bs, n_ag, n_en)
    attack_sum = attack.sum(-1, keepdims=True)                     # (bs, n_ag, 1)
    own_in = jnp.concatenate([obs[..., :d0], actions[..., :n_na], attack_sum], -1)
    ally_in = obs[..., d1:].reshape(bs, n_ag, n_al, nf_al).sum(2)
    enemy_in = jnp.concatenate(
        [obs[..., d0:d1].reshape(bs, n_ag, n_en, nf_en).sum(2), attack_sum], -1)
    obs_feat = jnp.concatenate([own_in, ally_in, enemy_in], -1)    # (bs, n_ag, K_obs)
    k_obs = obs_feat.shape[-1]
    obs_feat = obs_feat.reshape(bs, n_ag * k_obs).astype(compute_dtype)

    # ---- state-path features (entity sums folded in)
    snf_al, snf_en = cfg.state_nf_al, cfg.state_nf_en
    en_off = n_ag * snf_al
    la_off = en_off + n_en * snf_en
    ally_state_sum = state[:, :en_off].reshape(bs, n_ag, snf_al).sum(1)
    enemy_state_sum = state[:, en_off:la_off].reshape(bs, n_en, snf_en).sum(1)
    if cfg.state_last_action:
        la = state[:, la_off:la_off + n_ag * n_actions].reshape(bs, n_ag, n_actions)
        sal = jnp.concatenate([ally_state_sum, la[..., :n_na].sum(1),
                               la[..., n_na:].sum((1, 2))[:, None]], -1)
    else:
        sal = ally_state_sum
    st_feat = jnp.concatenate([sal, enemy_state_sum], -1).astype(compute_dtype)
    k_st = st_feat.shape[-1]

    # ---- hypernet hoisted out of the kernel: one (n_ag,trd)x(trd,2*E*L) matmul
    tw = (task_repre @ params["w_hyp"] + params["b_hyp"]).reshape(n_ag, 2 * E, L)
    w2_st = jnp.transpose(tw[:, :E, :], (1, 0, 2)).reshape(E, n_ag * L)
    eye = jnp.eye(n_ag, dtype=jnp.float32)
    w2_obs = jnp.einsum("ab,ael->aebl", eye, tw[:, E:, :]).reshape(n_ag * E, n_ag * L)
    w2_st = w2_st.astype(compute_dtype)
    w2_obs = w2_obs.astype(compute_dtype)

    w1_obs = params["w1_obs"].astype(compute_dtype)
    w1_st = params["w1_st"].astype(compute_dtype)
    b1_obs = params["b1_obs"]          # f32 — bias adds stay on the f32 accumulator
    b1_st = params["b1_st"]

    # ---- row padding + batch tile choice (static under jit)
    padded_bs = max(_ROW_ALIGN, _round_up(bs, _ROW_ALIGN))
    tile_bs = min(_MAX_TILE_ROWS, padded_bs)
    padded_bs = _round_up(padded_bs, tile_bs)
    if padded_bs != bs:
        pad = padded_bs - bs
        obs_feat = jnp.pad(obs_feat, ((0, pad), (0, 0)))
        st_feat = jnp.pad(st_feat, ((0, pad), (0, 0)))

    grid = (padded_bs // tile_bs,)

    def resident(shape):                # weights/biases: constant block index -> VMEM-resident
        return pl.BlockSpec(shape, lambda i: (0, 0))

    out = pl.pallas_call(
        _pooling_encoder_kernel,
        out_shape=jax.ShapeDtypeStruct((padded_bs, n_ag * L), jnp.float32),
        grid=grid,
        in_specs=[
            pl.BlockSpec((tile_bs, n_ag * k_obs), lambda i: (i, 0)),
            pl.BlockSpec((tile_bs, k_st), lambda i: (i, 0)),
            resident((n_ag * k_obs, n_ag * E)),
            resident((1, n_ag * E)),
            resident((k_st, E)),
            resident((1, E)),
            resident((n_ag * E, n_ag * L)),
            resident((E, n_ag * L)),
        ],
        out_specs=pl.BlockSpec((tile_bs, n_ag * L), lambda i: (i, 0)),
        compiler_params=pltpu.CompilerParams(
            dimension_semantics=("parallel",),
            vmem_limit_bytes=32 * 1024 * 1024),
    )(obs_feat, st_feat, w1_obs, b1_obs, w1_st, b1_st, w2_obs, w2_st)

    # lane-dense kernel output -> (bs, n_ag, L) is a free trailing-dim reshape
    return out[:bs].reshape(bs, n_ag, L)


# ---------------------------------------------------------------------------
# Module wrapper (parameters + one-time kernel-layout rearrangement)
# ---------------------------------------------------------------------------

class PoolingEncoderPallas:
    def __init__(self, cfg: EncoderConfig, key, compute_dtype=jnp.bfloat16):
        self.cfg = cfg
        self.compute_dtype = compute_dtype
        n_ag, n_en = cfg.n_agents, cfg.n_enemies
        n_al = n_ag - 1
        E, L, trd = cfg.entity_embed_dim, cfg.state_latent_dim, cfg.task_repre_dim
        n_na1 = cfg.n_actions_no_attack + 1
        wrapped_own = cfg.own_obs_dim + n_na1
        obs_en_dim = cfg.obs_nf_en + 1
        obs_al_dim = cfg.obs_nf_al
        st_al = cfg.state_nf_al + (n_na1 if cfg.state_last_action else 0)
        st_en = cfg.state_nf_en

        def lin(k, din, dout):
            kw, kb = jax.random.split(k)
            w = jax.random.normal(kw, (din, dout), jnp.float32) * 0.1
            b = jax.random.normal(kb, (dout,), jnp.float32) * 0.01
            return w, b

        ks = jax.random.split(key, 6)
        w_own, b_own = lin(ks[0], wrapped_own, E)
        w_al, b_al = lin(ks[1], obs_al_dim, E)
        w_en, b_en = lin(ks[2], obs_en_dim, E)
        w_sal, b_sal = lin(ks[3], st_al, E)
        w_sen, b_sen = lin(ks[4], st_en, E)
        w_hyp, b_hyp = lin(ks[5], trd, 2 * E * L)

        # raw parameters (used only by the pure-jnp reference)
        self.raw = dict(w_own=w_own, b_own=b_own, w_al=w_al, b_al=b_al,
                        w_en=w_en, b_en=b_en, w_sal=w_sal, b_sal=b_sal,
                        w_sen=w_sen, b_sen=b_sen, w_hyp=w_hyp, b_hyp=b_hyp)

        # kernel-layout parameters (one-time rearrangement, zero per-call cost)
        # mean over entities: sum(x_e @ W + b) -> (sum x_e) @ W + n_e*b, scaled by 1/n_entities
        inv_obs = 1.0 / float(1 + n_al + n_en)
        inv_state = 1.0 / float(n_ag + n_en)
        # feature order must match wrapper concat: [own_wrapped | ally_sum | enemy_sum+attack_sum]
        w_obs_cat = jnp.concatenate([w_own, w_al, w_en], axis=0) * inv_obs       # (K_obs, E)
        k_obs = w_obs_cat.shape[0]
        eye = jnp.eye(n_ag, dtype=jnp.float32)
        w1_obs = jnp.einsum("ab,ke->akbe", eye, w_obs_cat).reshape(n_ag * k_obs, n_ag * E)
        b_obs_comb = (b_own + n_al * b_al + n_en * b_en) * inv_obs               # (E,)
        b1_obs = jnp.tile(b_obs_comb, (n_ag,)).reshape(1, n_ag * E)
        w1_st = jnp.concatenate([w_sal, w_sen], axis=0) * inv_state              # (K_st, E)
        b1_st = ((n_ag * b_sal + n_en * b_sen) * inv_state).reshape(1, E)

        self.params = dict(w1_obs=w1_obs, b1_obs=b1_obs, w1_st=w1_st, b1_st=b1_st,
                           w_hyp=w_hyp, b_hyp=b_hyp)

    def __call__(self, obs, state, actions, task_repre, compute_dtype=None):
        cdt = self.compute_dtype if compute_dtype is None else compute_dtype
        if obs.ndim == 3:
            bs = obs.shape[0]
        else:
            bs = obs.shape[0] // self.cfg.n_agents
        encoded = pooling_encoder_forward(self.params, obs, state, actions,
                                          task_repre, self.cfg, cdt)
        return encoded, bs

    # pure-jnp reference mirroring the PyTorch forward (per-entity slice loops)
    def reference(self, obs, state, actions, task_repre):
        cfg, p = self.cfg, self.raw
        n_ag, n_en = cfg.n_agents, cfg.n_enemies
        n_al = n_ag - 1
        nf_en, nf_al = cfg.obs_nf_en, cfg.obs_nf_al
        n_na = cfg.n_actions_no_attack
        n_act = n_na + n_en
        E, L = cfg.entity_embed_dim, cfg.state_latent_dim

        bs = obs.shape[0]
        obs2 = obs.reshape(bs * n_ag, -1)
        act2 = actions.reshape(bs * n_ag, -1)

        d0 = cfg.own_obs_dim
        own = obs2[:, :d0]
        enemy_feats = [obs2[:, d0 + i * nf_en: d0 + (i + 1) * nf_en] for i in range(n_en)]
        d1 = d0 + n_en * nf_en
        ally_feats = [obs2[:, d1 + i * nf_al: d1 + (i + 1) * nf_al] for i in range(n_al)]

        attack = act2[:, n_na:]
        compact = jnp.concatenate([act2[:, :n_na], attack.sum(-1, keepdims=True)], -1)
        own_obs = jnp.concatenate([own, compact], -1)
        enemy_stack = jnp.concatenate([jnp.stack(enemy_feats, 0), attack.T[..., None]], -1)
        ally_stack = jnp.stack(ally_feats, 0)

        h_own = own_obs @ p["w_own"] + p["b_own"]
        h_al = ally_stack @ p["w_al"] + p["b_al"]
        h_en = enemy_stack @ p["w_en"] + p["b_en"]
        obs_hidden = jnp.mean(jnp.concatenate([h_own[None], h_al, h_en], 0), 0
                              ).reshape(bs, n_ag, E)

        snf_al, snf_en = cfg.state_nf_al, cfg.state_nf_en
        a_s = jnp.stack([state[:, i * snf_al:(i + 1) * snf_al] for i in range(n_ag)], 0)
        off = n_ag * snf_al
        e_s = jnp.stack([state[:, off + i * snf_en: off + (i + 1) * snf_en]
                         for i in range(n_en)], 0)
        off += n_en * snf_en
        if cfg.state_last_action:
            la = jnp.stack([state[:, off + i * n_act: off + (i + 1) * n_act]
                            for i in range(n_ag)], 0)
            c = jnp.concatenate([la[..., :n_na], la[..., n_na:].sum(-1, keepdims=True)], -1)
            a_s = jnp.concatenate([a_s, c], -1)
        sh = jnp.mean(jnp.concatenate([a_s @ p["w_sal"] + p["b_sal"],
                                       e_s @ p["w_sen"] + p["b_sen"]], 0), 0)   # (bs, E)
        tot = jnp.concatenate(
            [jnp.broadcast_to(sh[:, None, :], (bs, n_ag, E)), obs_hidden], -1)
        tw = (task_repre @ p["w_hyp"] + p["b_hyp"]).reshape(n_ag, 2 * E, L)
        return jnp.einsum("bak,akl->bal", tot, tw), bs


# ---------------------------------------------------------------------------
# Demo
# ---------------------------------------------------------------------------

if __name__ == "__main__":
    bs, n_agents, n_enemies = 2, 3, 4
    cfg = EncoderConfig(
        n_agents=n_agents, n_enemies=n_enemies,
        own_obs_dim=6, obs_nf_en=5, obs_nf_al=5,
        state_nf_al=5, state_nf_en=3,
        n_actions_no_attack=6, state_last_action=True,
        entity_embed_dim=16, state_latent_dim=16, task_repre_dim=8,
    )
    obs_dim = (cfg.own_obs_dim + cfg.n_enemies * cfg.obs_nf_en
               + (cfg.n_agents - 1) * cfg.obs_nf_al)
    n_actions = cfg.n_actions_no_attack + cfg.n_enemies
    state_dim = (cfg.n_agents * cfg.state_nf_al + cfg.n_enemies * cfg.state_nf_en
                 + cfg.n_agents * n_actions)

    key = jax.random.PRNGKey(0)
    k_enc, k_obs, k_state, k_act, k_repre = jax.random.split(key, 5)

    enc = PoolingEncoderPallas(cfg, k_enc)   # default compute_dtype = bf16 (prod setting)

    obs = jax.random.normal(k_obs, (bs, n_agents, obs_dim), jnp.float32)
    state = jax.random.normal(k_state, (bs, state_dim), jnp.float32)
    act_idx = jax.random.randint(k_act, (bs, n_agents), 0, n_actions)
    actions = jax.nn.one_hot(act_idx, n_actions, dtype=jnp.float32)
    task_repre = jax.random.normal(k_repre, (n_agents, cfg.task_repre_dim), jnp.float32)

    ref, _ = enc.reference(obs, state, actions, task_repre)

    # 1) f32 compute path: only reassociation rounding vs. reference -> tight tolerance
    out_f32, out_bs = enc(obs, state, actions, task_repre, compute_dtype=jnp.float32)
    out_f32 = jax.block_until_ready(out_f32)
    assert out_f32.shape == (bs, n_agents, cfg.state_latent_dim)
    assert out_bs == bs
    assert jnp.allclose(out_f32, ref, rtol=1e-3, atol=1e-3), (
        float(jnp.max(jnp.abs(out_f32 - ref))))

    # 2) production dtype: bf16 MXU operands, f32 accumulation -> bf16-rounding tolerance
    out_bf16, _ = enc(obs, state, actions, task_repre, compute_dtype=jnp.bfloat16)
    out_bf16 = jax.block_until_ready(out_bf16)
    assert out_bf16.shape == (bs, n_agents, cfg.state_latent_dim)
    assert jnp.allclose(out_bf16, ref, rtol=3e-2, atol=3e-2), (
        float(jnp.max(jnp.abs(out_bf16 - ref))))

    print("KERNEL_OK")
</pallas_src>

<mosaic_0001>
module attributes {stable_mosaic.version = 11 : i64} {
  func.func @_pooling_encoder_kernel(%arg0: i32, %arg1: memref<16x72xf32, #tpu.memory_space<vmem>>, %arg2: memref<16x15xf32, #tpu.memory_space<vmem>>, %arg3: memref<72x48xf32, #tpu.memory_space<vmem>>, %arg4: memref<1x48xf32, #tpu.memory_space<vmem>>, %arg5: memref<15x16xf32, #tpu.memory_space<vmem>>, %arg6: memref<1x16xf32, #tpu.memory_space<vmem>>, %arg7: memref<48x48xf32, #tpu.memory_space<vmem>>, %arg8: memref<16x48xf32, #tpu.memory_space<vmem>>, %arg9: memref<16x48xf32, #tpu.memory_space<vmem>>) attributes {dimension_semantics = [#tpu.dimension_semantics<parallel>], iteration_bounds = array<i64: 1>, scalar_prefetch = 0 : i64, scratch_operands = 0 : i64, tpu.core_type = #tpu.core_type<tc>, window_params = [{transform_indices = @transform_0, window_bounds = array<i64: 16, 72>}, {transform_indices = @transform_1, window_bounds = array<i64: 16, 15>}, {pipeline_mode = #tpu.pipeline_mode<synchronous>, transform_indices = @transform_2, window_bounds = array<i64: 72, 48>}, {pipeline_mode = #tpu.pipeline_mode<synchronous>, transform_indices = @transform_3, window_bounds = array<i64: 1, 48>}, {pipeline_mode = #tpu.pipeline_mode<synchronous>, transform_indices = @transform_4, window_bounds = array<i64: 15, 16>}, {pipeline_mode = #tpu.pipeline_mode<synchronous>, transform_indices = @transform_5, window_bounds = array<i64: 1, 16>}, {pipeline_mode = #tpu.pipeline_mode<synchronous>, transform_indices = @transform_6, window_bounds = array<i64: 48, 48>}, {pipeline_mode = #tpu.pipeline_mode<synchronous>, transform_indices = @transform_7, window_bounds = array<i64: 16, 48>}, {transform_indices = @transform_8, window_bounds = array<i64: 16, 48>}]} {
    %c0 = arith.constant 0 : index
    %c0_0 = arith.constant 0 : index
    %0 = vector.load %arg1[%c0, %c0_0] : memref<16x72xf32, #tpu.memory_space<vmem>>, vector<16x72xf32>
    %c0_1 = arith.constant 0 : index
    %c0_2 = arith.constant 0 : index
    %1 = vector.load %arg3[%c0_1, %c0_2] : memref<72x48xf32, #tpu.memory_space<vmem>>, vector<72x48xf32>
    %cst = arith.constant dense<0.000000e+00> : vector<16x48xf32>
    %2 = tpu.matmul %0, %1, %cst {dimension_numbers = #tpu.dot_dimension_numbers<[1], [0], [0], [1], [0, 0, 1, 1], [], []>} : vector<16x72xf32>, vector<72x48xf32>, vector<16x48xf32> -> vector<16x48xf32>
    %c0_3 = arith.constant 0 : index
    %c0_4 = arith.constant 0 : index
    %3 = vector.load %arg4[%c0_3, %c0_4] : memref<1x48xf32, #tpu.memory_space<vmem>>, vector<1x48xf32>
    %4 = vector.broadcast %3 : vector<1x48xf32> to vector<16x48xf32>
    %5 = arith.addf %2, %4 : vector<16x48xf32>
    %c0_5 = arith.constant 0 : index
    %c0_6 = arith.constant 0 : index
    %6 = vector.load %arg2[%c0_5, %c0_6] : memref<16x15xf32, #tpu.memory_space<vmem>>, vector<16x15xf32>
    %c0_7 = arith.constant 0 : index
    %c0_8 = arith.constant 0 : index
    %7 = vector.load %arg5[%c0_7, %c0_8] : memref<15x16xf32, #tpu.memory_space<vmem>>, vector<15x16xf32>
    %cst_9 = arith.constant dense<0.000000e+00> : vector<16x16xf32>
    %8 = tpu.matmul %6, %7, %cst_9 {dimension_numbers = #tpu.dot_dimension_numbers<[1], [0], [0], [1], [0, 0, 1, 1], [], []>} : vector<16x15xf32>, vector<15x16xf32>, vector<16x16xf32> -> vector<16x16xf32>
    %c0_10 = arith.constant 0 : index
    %c0_11 = arith.constant 0 : index
    %9 = vector.load %arg6[%c0_10, %c0_11] : memref<1x16xf32, #tpu.memory_space<vmem>>, vector<1x16xf32>
    %10 = vector.broadcast %9 : vector<1x16xf32> to vector<16x16xf32>
    %11 = arith.addf %8, %10 : vector<16x16xf32>
    %c0_12 = arith.constant 0 : index
    %c0_13 = arith.constant 0 : index
    %12 = vector.load %arg7[%c0_12, %c0_13] : memref<48x48xf32, #tpu.memory_space<vmem>>, vector<48x48xf32>
    %cst_14 = arith.constant dense<0.000000e+00> : vector<16x48xf32>
    %13 = tpu.matmul %5, %12, %cst_14 {dimension_numbers = #tpu.dot_dimension_numbers<[1], [0], [0], [1], [0, 0, 1, 1], [], []>} : vector<16x48xf32>, vector<48x48xf32>, vector<16x48xf32> -> vector<16x48xf32>
    %c0_15 = arith.constant 0 : index
    %c0_16 = arith.constant 0 : index
    %14 = vector.load %arg8[%c0_15, %c0_16] : memref<16x48xf32, #tpu.memory_space<vmem>>, vector<16x48xf32>
    %cst_17 = arith.constant dense<0.000000e+00> : vector<16x48xf32>
    %15 = tpu.matmul %11, %14, %cst_17 {dimension_numbers = #tpu.dot_dimension_numbers<[1], [0], [0], [1], [0, 0, 1, 1], [], []>} : vector<16x16xf32>, vector<16x48xf32>, vector<16x48xf32> -> vector<16x48xf32>
    %16 = arith.addf %13, %15 : vector<16x48xf32>
    %c0_18 = arith.constant 0 : index
    %c0_19 = arith.constant 0 : index
    %17 = vector.load %arg9[%c0_18, %c0_19] : memref<16x48xf32, #tpu.memory_space<vmem>>, vector<16x48xf32>
    tpu.vector_store %arg9[%c0_18, %c0_19], %16 {strides = array<i32>} : memref<16x48xf32, #tpu.memory_space<vmem>>, vector<16x48xf32>,
    return
  }
  func.func @transform_0(%arg0: i32) -> (i32, i32) {
    %c0_i32 = arith.constant 0 : i32
    %c0_i32_0 = arith.constant 0 : i32
    return %arg0, %c0_i32 : i32, i32
  }
  func.func @transform_1(%arg0: i32) -> (i32, i32) {
    %c0_i32 = arith.constant 0 : i32
    %c0_i32_0 = arith.constant 0 : i32
    return %arg0, %c0_i32 : i32, i32
  }
  func.func @transform_2(%arg0: i32) -> (i32, i32) {
    %c0_i32 = arith.constant 0 : i32
    %c0_i32_0 = arith.constant 0 : i32
    %c0_i32_1 = arith.constant 0 : i32
    return %c0_i32, %c0_i32_0 : i32, i32
  }
  func.func @transform_3(%arg0: i32) -> (i32, i32) {
    %c0_i32 = arith.constant 0 : i32
    %c0_i32_0 = arith.constant 0 : i32
    %c0_i32_1 = arith.constant 0 : i32
    return %c0_i32, %c0_i32_0 : i32, i32
  }
  func.func @transform_4(%arg0: i32) -> (i32, i32) {
    %c0_i32 = arith.constant 0 : i32
    %c0_i32_0 = arith.constant 0 : i32
    %c0_i32_1 = arith.constant 0 : i32
    return %c0_i32, %c0_i32_0 : i32, i32
  }
  func.func @transform_5(%arg0: i32) -> (i32, i32) {
    %c0_i32 = arith.constant 0 : i32
    %c0_i32_0 = arith.constant 0 : i32
    %c0_i32_1 = arith.constant 0 : i32
    return %c0_i32, %c0_i32_0 : i32, i32
  }
  func.func @transform_6(%arg0: i32) -> (i32, i32) {
    %c0_i32 = arith.constant 0 : i32
    %c0_i32_0 = arith.constant 0 : i32
    %c0_i32_1 = arith.constant 0 : i32
    return %c0_i32, %c0_i32_0 : i32, i32
  }
  func.func @transform_7(%arg0: i32) -> (i32, i32) {
    %c0_i32 = arith.constant 0 : i32
    %c0_i32_0 = arith.constant 0 : i32
    %c0_i32_1 = arith.constant 0 : i32
    return %c0_i32, %c0_i32_0 : i32, i32
  }
  func.func @transform_8(%arg0: i32) -> (i32, i32) {
    %c0_i32 = arith.constant 0 : i32
    %c0_i32_0 = arith.constant 0 : i32
    return %arg0, %c0_i32 : i32, i32
  }
}

</mosaic_0001>

<llo_original>
// kernel: pooling_encoder_forward.1
$region0: #{pooling_encoder_forward.1}
  #allocation0 [shape = 'u32[]', space=smem, size = 0x4, offset = 0x4, fixed_abs, tag = 'smem constant byte address 0x4 - core index']
  #allocation1 [shape = 'u32[144,128]{1,0:T(1,128)}', space=vmem, size = 0x12000, scoped, tag = 'internal scratch']
  %s0 = inlined_call_operand.vmem [shape: f32[16,72], index: 0, kind: input, shape index: {}]
  %s1 = inlined_call_operand.vmem [shape: f32[16,15], index: 1, kind: input, shape index: {}]
  %s2 = inlined_call_operand.vmem [shape: f32[72,48], index: 2, kind: input, shape index: {}]
  %s3 = inlined_call_operand.vmem [shape: f32[1,48], index: 3, kind: input, shape index: {}]
  %s4 = inlined_call_operand.vmem [shape: f32[15,16], index: 4, kind: input, shape index: {}]
  %s5 = inlined_call_operand.vmem [shape: f32[1,16], index: 5, kind: input, shape index: {}]
  %s6 = inlined_call_operand.vmem [shape: f32[48,48], index: 6, kind: input, shape index: {}]
  %s7 = inlined_call_operand.vmem [shape: f32[16,48], index: 7, kind: input, shape index: {}]
  %s8 = inlined_call_operand.vmem [shape: f32[16,48], index: 8, kind: output, shape index: {}]
  %s9 = sld [smem:[#allocation0]]
  $region42: #{pooling_encoder_forward.1} parent=0
    _
  %s11 = ssub.s32 1, %s9
  %s12 = scalar_select 0, %s11, %s9
  // Predicated region
  $region2: #{pooling_encoder_forward.1} parent=0 // pred_check
    _
  $region3: #{pooling_encoder_forward.1} parent=0 // pred_check_branch
    %14 = sbr.rel (0) target = $region5
  $region4: #{pooling_encoder_forward.1} parent=0 // pred_region
    _
  $region5: #{pooling_encoder_forward.1} parent=0 // pred_fallthru
    _
  // Predicated region
  $region6: #{pooling_encoder_forward.1} parent=0 // pred_check
    _
  $region7: #{pooling_encoder_forward.1} parent=0 // pred_check_branch
    %16 = sbr.rel (0) target = $region9
  $region8: #{pooling_encoder_forward.1} parent=0 // pred_region
    _
  $region9: #{pooling_encoder_forward.1} parent=0 // pred_fallthru
    _
  // Predicated region
  $region10: #{pooling_encoder_forward.1} parent=0 // pred_check
    _
  $region11: #{pooling_encoder_forward.1} parent=0 // pred_check_branch
    %18 = sbr.rel (0) target = $region13
  $region12: #{pooling_encoder_forward.1} parent=0 // pred_region
    _
  $region13: #{pooling_encoder_forward.1} parent=0 // pred_fallthru
    _
  // Predicated region
  $region14: #{pooling_encoder_forward.1} parent=0 // pred_check
    _
  $region15: #{pooling_encoder_forward.1} parent=0 // pred_check_branch
    %20 = sbr.rel (0) target = $region17
  $region16: #{pooling_encoder_forward.1} parent=0 // pred_region
    _
  $region17: #{pooling_encoder_forward.1} parent=0 // pred_fallthru
    _
  // Predicated region
  $region18: #{pooling_encoder_forward.1} parent=0 // pred_check
    _
  $region19: #{pooling_encoder_forward.1} parent=0 // pred_check_branch
    %22 = sbr.rel (0) target = $region21
  $region20: #{pooling_encoder_forward.1} parent=0 // pred_region
    _
  $region21: #{pooling_encoder_forward.1} parent=0 // pred_fallthru
    _
  // Predicated region
  $region22: #{pooling_encoder_forward.1} parent=0 // pred_check
    _
  $region23: #{pooling_encoder_forward.1} parent=0 // pred_check_branch
    %24 = sbr.rel (0) target = $region25
  $region24: #{pooling_encoder_forward.1} parent=0 // pred_region
    _
  $region25: #{pooling_encoder_forward.1} parent=0 // pred_fallthru
    _
  // Predicated region
  $region26: #{pooling_encoder_forward.1} parent=0 // pred_check
    _
  $region27: #{pooling_encoder_forward.1} parent=0 // pred_check_branch
    %26 = sbr.rel (0) target = $region29
  $region28: #{pooling_encoder_forward.1} parent=0 // pred_region
    _
  $region29: #{pooling_encoder_forward.1} parent=0 // pred_fallthru
    _
  // Predicated region
  $region30: #{pooling_encoder_forward.1} parent=0 // pred_check
    _
  $region31: #{pooling_encoder_forward.1} parent=0 // pred_check_branch
    %28 = sbr.rel (0) target = $region33
  $region32: #{pooling_encoder_forward.1} parent=0 // pred_region
    _
  $region33: #{pooling_encoder_forward.1} parent=0 // pred_fallthru
    _
  %v29 = vld [vmem:[%s0] sm:$0xff]
  %v30 = vld [vmem:[%s0 + $0x8] sm:$0xff]
  %v31 = vld [vmem:[%s2] sm:$0xff]
  %v32 = vld [vmem:[%s2 + $0x8] sm:$0xff]
  %v33 = vld [vmem:[%s2 + $0x10] sm:$0xff]
  %v34 = vld [vmem:[%s2 + $0x18] sm:$0xff]
  %v35 = vld [vmem:[%s2 + $0x20] sm:$0xff]
  %v36 = vld [vmem:[%s2 + $0x28] sm:$0xff]
  %v37 = vld [vmem:[%s2 + $0x30] sm:$0xff]
  %v38 = vld [vmem:[%s2 + $0x38] sm:$0xff]
  %v39 = vld [vmem:[%s2 + $0x40] sm:$0xff]
  %v40 = vld [vmem:[%s3] sm:$0x1]
  %v42 = vlaneseq
  %v43 = vshrl.u32 %v42, 7
  %v44 = vsub.s32 0, %v43
  %v45 = vrot.slane %v40, %v44
  %vm47 = vcmask 588800
  %v49 = vsel %vm47, %v29, 0
  %v52 = vsel %vm47, %v30, 0
  %54 = vmatprep.subr.mxu0 0.0
  %55 = vmatpush1.msra.mxu0 %v31
  %56 = vmatprep.subr.mxu0 0.0
  %57 = vmatpush1.msra.mxu0 %v32
  %58 = vmatprep.subr.mxu0 0.0
  %59 = vmatpush1.msra.mxu0 %v33
  %60 = vmatprep.subr.mxu0 0.0
  %61 = vmatpush1.msra.mxu0 %v34
  %62 = vmatprep.subr.mxu0 0.0
  %63 = vmatpush1.msra.mxu0 %v35
  %64 = vmatprep.subr.mxu0 0.0
  %65 = vmatpush1.msra.mxu0 %v36
  %66 = vmatprep.subr.mxu0 0.0
  %67 = vmatpush1.msra.mxu0 %v37
  %68 = vmatprep.subr.mxu0 0.0
  %69 = vmatpush1.msra.mxu0 %v38
  %70 = vmatprep.subr.mxu0 0.0
  %71 = vmatpush1.msra.mxu0 %v39
  %72 = vmatprep.subr.mxu0 0.0
  %73 = vmatpush1.msra.mxu0 0.0
  %74 = vmatprep.subr.mxu0 0.0
  %75 = vmatpush1.msra.mxu0 0.0
  %76 = vmatprep.subr.mxu0 0.0
  %77 = vmatpush1.msra.mxu0 0.0
  %78 = vmatprep.subr.mxu0 0.0
  %79 = vmatpush1.msra.mxu0 0.0
  %80 = vmatprep.subr.mxu0 0.0
  %81 = vmatpush1.msra.mxu0 0.0
  %82 = vmatprep.subr.mxu0 0.0
  %83 = vmatpush1.msra.mxu0 0.0
  %84 = vmatprep.subr.mxu0 0.0
  %85 = vmatpush1.msra.mxu0 0.0
  %86 = vmatprep.subr.mxu0 0.0
  %87 = vmatpush1.msra.mxu0 0.0
  %88 = vmatprep.subr.mxu0 0.0
  %89 = vmatpush1.msra.mxu0 0.0
  %90 = vmatprep.subr.mxu0 0.0
  %91 = vmatpush1.msra.mxu0 0.0
  %92 = vmatprep.subr.mxu0 0.0
  %93 = vmatpush1.msra.mxu0 0.0
  %94 = vmatprep.subr.mxu0 0.0
  %95 = vmatpush1.msra.mxu0 0.0
  %96 = vmatprep.subr.mxu0 0.0
  %97 = vmatpush1.msra.mxu0 0.0
  %98 = vmatprep.subr.mxu0 0.0
  %99 = vmatpush1.msra.mxu0 0.0
  %100 = vmatprep.subr.mxu0 0.0
  %101 = vmatpush1.msra.mxu0 0.0
  %102 = vmatprep.subr.mxu0 0.0
  %103 = vmatpush1.msra.mxu0 0.0
  %104 = vmatprep.subr.mxu0 0.0
  %105 = vmatpush1.msra.mxu0 0.0
  %106 = vmatprep.subr.mxu0 0.0
  %107 = vmatpush1.msra.mxu0 0.0
  %108 = vmatprep.subr.mxu0 0.0
  %109 = vmatpush1.msra.mxu0 0.0
  %110 = vmatprep.subr.mxu0 0.0
  %111 = vmatpush1.msra.mxu0 0.0
  %112 = vmatprep.subr.mxu0 0.0
  %113 = vmatpush1.msra.mxu0 0.0
  %114 = vmatprep.subr.mxu0 0.0
  %115 = vmatpush1.msra.mxu0 0.0
  %116 = vmatprep.subr.mxu0 0.0
  %117 = vmatpush1.msra.mxu0 0.0
  %118 = vmatprep.mubr.f32.mxu0 0.0
  %119 = vmatmul.mubr.f32.gmra.mrb[0].mxu0 %v49
  %v120 = vpop.f32.mrb[0].mxu0
  %v121 = vadd.f32 %v45, %v120
  %v122 = vpop.f32.mrb[0].mxu0
  %123 = vmatprep.mubr.f32.mxu0 0.0
  %124 = vmatmul.mubr.f32.gmra.mrb[0].mxu0 %v52
  %v125 = vpop.f32.mrb[0].mxu0
  %v126 = vadd.f32 %v45, %v125
  %v127 = vpop.f32.mrb[0].mxu0
  %128 = vdwg.mxu0
  %v129 = vld [vmem:[%s1] sm:$0xff]
  %v130 = vld [vmem:[%s1 + $0x8] sm:$0xff]
  %v131 = vld [vmem:[%s4] sm:$0xff]
  %v132 = vld [vmem:[%s4 + $0x8] sm:$0x7f]
  %v133 = vld [vmem:[%s5] sm:$0x1]
  %v135 = vlaneseq
  %v136 = vshrl.u32 %v135, 7
  %v137 = vsub.s32 0, %v136
  %v138 = vrot.slane %v133, %v137
  %vm140 = vcmask 121856
  %v142 = vsel %vm140, %v129, 0
  %v145 = vsel %vm140, %v130, 0
  %vm147 = vcmask 1046528
  %v149 = vsel %vm147, %v132, 0
  %151 = vmatprep.subr.mxu0 0.0
  %152 = vmatpush1.msra.mxu0 %v131
  %153 = vmatprep.subr.mxu0 0.0
  %154 = vmatpush1.msra.mxu0 %v149
  %155 = vmatprep.subr.mxu0 0.0
  %156 = vmatpush1.msra.mxu0 0.0
  %157 = vmatprep.subr.mxu0 0.0
  %158 = vmatpush1.msra.mxu0 0.0
  %159 = vmatprep.subr.mxu0 0.0
  %160 = vmatpush1.msra.mxu0 0.0
  %161 = vmatprep.subr.mxu0 0.0
  %162 = vmatpush1.msra.mxu0 0.0
  %163 = vmatprep.subr.mxu0 0.0
  %164 = vmatpush1.msra.mxu0 0.0
  %165 = vmatprep.subr.mxu0 0.0
  %166 = vmatpush1.msra.mxu0 0.0
  %167 = vmatprep.subr.mxu0 0.0
  %168 = vmatpush1.msra.mxu0 0.0
  %169 = vmatprep.subr.mxu0 0.0
  %170 = vmatpush1.msra.mxu0 0.0
  %171 = vmatprep.subr.mxu0 0.0
  %172 = vmatpush1.msra.mxu0 0.0
  %173 = vmatprep.subr.mxu0 0.0
  %174 = vmatpush1.msra.mxu0 0.0
  %175 = vmatprep.subr.mxu0 0.0
  %176 = vmatpush1.msra.mxu0 0.0
  %177 = vmatprep.subr.mxu0 0.0
  %178 = vmatpush1.msra.mxu0 0.0
  %179 = vmatprep.subr.mxu0 0.0
  %180 = vmatpush1.msra.mxu0 0.0
  %181 = vmatprep.subr.mxu0 0.0
  %182 = vmatpush1.msra.mxu0 0.0
  %183 = vmatprep.subr.mxu0 0.0
  %184 = vmatpush1.msra.mxu0 0.0
  %185 = vmatprep.subr.mxu0 0.0
  %186 = vmatpush1.msra.mxu0 0.0
  %187 = vmatprep.subr.mxu0 0.0
  %188 = vmatpush1.msra.mxu0 0.0
  %189 = vmatprep.subr.mxu0 0.0
  %190 = vmatpush1.msra.mxu0 0.0
  %191 = vmatprep.subr.mxu0 0.0
  %192 = vmatpush1.msra.mxu0 0.0
  %193 = vmatprep.subr.mxu0 0.0
  %194 = vmatpush1.msra.mxu0 0.0
  %195 = vmatprep.subr.mxu0 0.0
  %196 = vmatpush1.msra.mxu0 0.0
  %197 = vmatprep.subr.mxu0 0.0
  %198 = vmatpush1.msra.mxu0 0.0
  %199 = vmatprep.subr.mxu0 0.0
  %200 = vmatpush1.msra.mxu0 0.0
  %201 = vmatprep.subr.mxu0 0.0
  %202 = vmatpush1.msra.mxu0 0.0
  %203 = vmatprep.subr.mxu0 0.0
  %204 = vmatpush1.msra.mxu0 0.0
  %205 = vmatprep.subr.mxu0 0.0
  %206 = vmatpush1.msra.mxu0 0.0
  %207 = vmatprep.subr.mxu0 0.0
  %208 = vmatpush1.msra.mxu0 0.0
  %209 = vmatprep.subr.mxu0 0.0
  %210 = vmatpush1.msra.mxu0 0.0
  %211 = vmatprep.subr.mxu0 0.0
  %212 = vmatpush1.msra.mxu0 0.0
  %213 = vmatprep.subr.mxu0 0.0
  %214 = vmatpush1.msra.mxu0 0.0
  %215 = vmatprep.mubr.f32.mxu0 0.0
  %216 = vmatmul.mubr.f32.gmra.mrb[0].mxu0 %v142
  %v217 = vpop.f32.mrb[0].mxu0
  %v218 = vadd.f32 %v138, %v217
  %v219 = vpop.f32.mrb[0].mxu0
  %220 = vmatprep.mubr.f32.mxu0 0.0
  %221 = vmatmul.mubr.f32.gmra.mrb[0].mxu0 %v145
  %v222 = vpop.f32.mrb[0].mxu0
  %v223 = vadd.f32 %v138, %v222
  %v224 = vpop.f32.mrb[0].mxu0
  %225 = vdwg.mxu0
  %v226 = vld [vmem:[%s6] sm:$0xff]
  %v227 = vld [vmem:[%s6 + $0x8] sm:$0xff]
  %v228 = vld [vmem:[%s6 + $0x10] sm:$0xff]
  %v229 = vld [vmem:[%s6 + $0x18] sm:$0xff]
  %v230 = vld [vmem:[%s6 + $0x20] sm:$0xff]
  %v231 = vld [vmem:[%s6 + $0x28] sm:$0xff]
  %v232 = vld [vmem:[%s7] sm:$0xff]
  %v233 = vld [vmem:[%s7 + $0x8] sm:$0xff]
  %vm234 = vcmask 130048
  %v236 = vsel %vm234, %v218, 0
  %v239 = vsel %vm234, %v223, 0
  %241 = vmatprep.subr.mxu0 0.0
  %242 = vmatpush1.msra.mxu0 %v232
  %243 = vmatprep.subr.mxu0 0.0
  %244 = vmatpush1.msra.mxu0 %v233
  %245 = vmatprep.subr.mxu0 0.0
  %246 = vmatpush1.msra.mxu0 0.0
  %247 = vmatprep.subr.mxu0 0.0
  %248 = vmatpush1.msra.mxu0 0.0
  %249 = vmatprep.subr.mxu0 0.0
  %250 = vmatpush1.msra.mxu0 0.0
  %251 = vmatprep.subr.mxu0 0.0
  %252 = vmatpush1.msra.mxu0 0.0
  %253 = vmatprep.subr.mxu0 0.0
  %254 = vmatpush1.msra.mxu0 0.0
  %255 = vmatprep.subr.mxu0 0.0
  %256 = vmatpush1.msra.mxu0 0.0
  %257 = vmatprep.subr.mxu0 0.0
  %258 = vmatpush1.msra.mxu0 0.0
  %259 = vmatprep.subr.mxu0 0.0
  %260 = vmatpush1.msra.mxu0 0.0
  %261 = vmatprep.subr.mxu0 0.0
  %262 = vmatpush1.msra.mxu0 0.0
  %263 = vmatprep.subr.mxu0 0.0
  %264 = vmatpush1.msra.mxu0 0.0
  %265 = vmatprep.subr.mxu0 0.0
  %266 = vmatpush1.msra.mxu0 0.0
  %267 = vmatprep.subr.mxu0 0.0
  %268 = vmatpush1.msra.mxu0 0.0
  %269 = vmatprep.subr.mxu0 0.0
  %270 = vmatpush1.msra.mxu0 0.0
  %271 = vmatprep.subr.mxu0 0.0
  %272 = vmatpush1.msra.mxu0 0.0
  %273 = vmatprep.subr.mxu0 0.0
  %274 = vmatpush1.msra.mxu0 0.0
  %275 = vmatprep.subr.mxu0 0.0
  %276 = vmatpush1.msra.mxu0 0.0
  %277 = vmatprep.subr.mxu0 0.0
  %278 = vmatpush1.msra.mxu0 0.0
  %279 = vmatprep.subr.mxu0 0.0
  %280 = vmatpush1.msra.mxu0 0.0
  %281 = vmatprep.subr.mxu0 0.0
  %282 = vmatpush1.msra.mxu0 0.0
  %283 = vmatprep.subr.mxu0 0.0
  %284 = vmatpush1.msra.mxu0 0.0
  %285 = vmatprep.subr.mxu0 0.0
  %286 = vmatpush1.msra.mxu0 0.0
  %287 = vmatprep.subr.mxu0 0.0
  %288 = vmatpush1.msra.mxu0 0.0
  %289 = vmatprep.subr.mxu0 0.0
  %290 = vmatpush1.msra.mxu0 0.0
  %291 = vmatprep.subr.mxu0 0.0
  %292 = vmatpush1.msra.mxu0 0.0
  %293 = vmatprep.subr.mxu0 0.0
  %294 = vmatpush1.msra.mxu0 0.0
  %295 = vmatprep.subr.mxu0 0.0
  %296 = vmatpush1.msra.mxu0 0.0
  %297 = vmatprep.subr.mxu0 0.0
  %298 = vmatpush1.msra.mxu0 0.0
  %299 = vmatprep.subr.mxu0 0.0
  %300 = vmatpush1.msra.mxu0 0.0
  %301 = vmatprep.subr.mxu0 0.0
  %302 = vmatpush1.msra.mxu0 0.0
  %303 = vmatprep.subr.mxu0 0.0
  %304 = vmatpush1.msra.mxu0 0.0
  %305 = vmatprep.mubr.f32.mxu0 0.0
  %306 = vmatmul.mubr.f32.gmra.mrb[0].mxu0 %v236
  %v307 = vpop.f32.mrb[0].mxu0
  %v308 = vadd.f32 0.0, %v307
  %v309 = vpop.f32.mrb[0].mxu0
  %310 = vmatprep.mubr.f32.mxu0 0.0
  %311 = vmatmul.mubr.f32.gmra.mrb[0].mxu0 %v239
  %v312 = vpop.f32.mrb[0].mxu0
  %v313 = vadd.f32 0.0, %v312
  %v314 = vpop.f32.mrb[0].mxu0
  %315 = vdwg.mxu0
  %vm316 = vcmask 392192
  %v318 = vsel %vm316, %v121, 0
  %v321 = vsel %vm316, %v126, 0
  %323 = vmatprep.subr.mxu0 0.0
  %324 = vmatpush1.msra.mxu0 %v226
  %325 = vmatprep.subr.mxu0 0.0
  %326 = vmatpush1.msra.mxu0 %v227
  %327 = vmatprep.subr.mxu0 0.0
  %328 = vmatpush1.msra.mxu0 %v228
  %329 = vmatprep.subr.mxu0 0.0
  %330 = vmatpush1.msra.mxu0 %v229
  %331 = vmatprep.subr.mxu0 0.0
  %332 = vmatpush1.msra.mxu0 %v230
  %333 = vmatprep.subr.mxu0 0.0
  %334 = vmatpush1.msra.mxu0 %v231
  %335 = vmatprep.subr.mxu0 0.0
  %336 = vmatpush1.msra.mxu0 0.0
  %337 = vmatprep.subr.mxu0 0.0
  %338 = vmatpush1.msra.mxu0 0.0
  %339 = vmatprep.subr.mxu0 0.0
  %340 = vmatpush1.msra.mxu0 0.0
  %341 = vmatprep.subr.mxu0 0.0
  %342 = vmatpush1.msra.mxu0 0.0
  %343 = vmatprep.subr.mxu0 0.0
  %344 = vmatpush1.msra.mxu0 0.0
  %345 = vmatprep.subr.mxu0 0.0
  %346 = vmatpush1.msra.mxu0 0.0
  %347 = vmatprep.subr.mxu0 0.0
  %348 = vmatpush1.msra.mxu0 0.0
  %349 = vmatprep.subr.mxu0 0.0
  %350 = vmatpush1.msra.mxu0 0.0
  %351 = vmatprep.subr.mxu0 0.0
  %352 = vmatpush1.msra.mxu0 0.0
  %353 = vmatprep.subr.mxu0 0.0
  %354 = vmatpush1.msra.mxu0 0.0
  %355 = vmatprep.subr.mxu0 0.0
  %356 = vmatpush1.msra.mxu0 0.0
  %357 = vmatprep.subr.mxu0 0.0
  %358 = vmatpush1.msra.mxu0 0.0
  %359 = vmatprep.subr.mxu0 0.0
  %360 = vmatpush1.msra.mxu0 0.0
  %361 = vmatprep.subr.mxu0 0.0
  %362 = vmatpush1.msra.mxu0 0.0
  %363 = vmatprep.subr.mxu0 0.0
  %364 = vmatpush1.msra.mxu0 0.0
  %365 = vmatprep.subr.mxu0 0.0
  %366 = vmatpush1.msra.mxu0 0.0
  %367 = vmatprep.subr.mxu0 0.0
  %368 = vmatpush1.msra.mxu0 0.0
  %369 = vmatprep.subr.mxu0 0.0
  %370 = vmatpush1.msra.mxu0 0.0
  %371 = vmatprep.subr.mxu0 0.0
  %372 = vmatpush1.msra.mxu0 0.0
  %373 = vmatprep.subr.mxu0 0.0
  %374 = vmatpush1.msra.mxu0 0.0
  %375 = vmatprep.subr.mxu0 0.0
  %376 = vmatpush1.msra.mxu0 0.0
  %377 = vmatprep.subr.mxu0 0.0
  %378 = vmatpush1.msra.mxu0 0.0
  %379 = vmatprep.subr.mxu0 0.0
  %380 = vmatpush1.msra.mxu0 0.0
  %381 = vmatprep.subr.mxu0 0.0
  %382 = vmatpush1.msra.mxu0 0.0
  %383 = vmatprep.subr.mxu0 0.0
  %384 = vmatpush1.msra.mxu0 0.0
  %385 = vmatprep.subr.mxu0 0.0
  %386 = vmatpush1.msra.mxu0 0.0
  %387 = vmatprep.mubr.f32.mxu0 0.0
  %388 = vmatmul.mubr.f32.gmra.mrb[0].mxu0 %v318
  %v389 = vpop.f32.mrb[0].mxu0
  %v390 = vadd.f32 %v308, %v389
  %v391 = vpop.f32.mrb[0].mxu0
  %392 = vmatprep.mubr.f32.mxu0 0.0
  %393 = vmatmul.mubr.f32.gmra.mrb[0].mxu0 %v321
  %v394 = vpop.f32.mrb[0].mxu0
  %v395 = vadd.f32 %v313, %v394
  %v396 = vpop.f32.mrb[0].mxu0
  %397 = vdwg.mxu0
  %398 = vst.msk [vmem:[%s8] sm:$0xff] %vm316, %v390
  %399 = vst.msk [vmem:[%s8 + $0x8] sm:$0xff] %vm316, %v395
  // Predicated region
  $region34: #{pooling_encoder_forward.1} parent=0 // pred_check
    _
  $region35: #{pooling_encoder_forward.1} parent=0 // pred_check_branch
    %401 = sbr.rel (0) target = $region37
  $region36: #{pooling_encoder_forward.1} parent=0 // pred_region
    _
  $region37: #{pooling_encoder_forward.1} parent=0 // pred_fallthru
    _
  // Predicated region
  $region38: #{pooling_encoder_forward.1} parent=0 // pred_check
    _
  $region39: #{pooling_encoder_forward.1} parent=0 // pred_check_branch
    %403 = sbr.rel (0) target = $region41
  $region40: #{pooling_encoder_forward.1} parent=0 // pred_region
    _
  $region41: #{pooling_encoder_forward.1} parent=0 // pred_fallthru
    _

</llo_original>
